<compile_context>
chip_gen: v7x
topology: tpu7x:2x2x1
jax: 0.10.0
libtpu: 0.0.40
codegen_flags: <defaults>
</compile_context>

<pallas_src>
import jax
import jax.numpy as jnp
from jax.experimental import pallas as pl
from jax.experimental.pallas import tpu as pltpu


# --------------------------------------------------------------------------- #
# Generation-aware sizing
# --------------------------------------------------------------------------- #
def _device_defaults():
    """Returns (num_parallel_slices, vmem_limit_bytes, target_tile_rows)."""
    kind = ""
    try:
        kind = jax.devices()[0].device_kind.lower()
    except Exception:  # pragma: no cover - defensive (interpret / odd backends)
        pass
    if "v7" in kind:
        # 2 TensorCores/chip, 64 MiB VMEM/TC, ~3.2 TB/s HBM: use both cores,
        # raise the scoped-VMEM cap, amortize per-step overhead with big blocks.
        return 2, 48 * 1024 * 1024, 16384
    if ("v4" in kind) or ("v5p" in kind):
        # Megacore chips: 2 TCs share the chip, keep the parallel axis.
        return 2, 32 * 1024 * 1024, 8192
    # v5e / v6e are single-TC: a leading "parallel" axis is just a serial loop
    # that adds a duplicated clamped block + an extra epilogue -> 1 slice.
    return 1, 32 * 1024 * 1024, 8192


def _best_2d_view(n_elems, max_cols=2048):
    """Pick (rows, cols) with rows*cols == n_elems maximizing vreg lane use."""
    if n_elems % 128 == 0:
        return n_elems // 128, 128                     # fully lane-dense
    best_c, best_u = 1, 0.0
    for c in range(1, min(max_cols, n_elems) + 1):
        if n_elems % c:
            continue
        u = c / float(pl.cdiv(c, 128) * 128)           # lane utilization
        if u > best_u or (u == best_u and c > best_c):
            best_c, best_u = c, u
    return n_elems // best_c, best_c


def _pick_tile(rows_total, target, row_bytes, vmem_limit):
    """Row-tile size: multiple of 8 (or full extent), within a VMEM budget."""
    budget = int(vmem_limit * 0.7)                     # headroom: out block etc.
    cap = max(8, (budget // max(row_bytes, 1)) // 8 * 8)
    target = max(8, min(int(target), cap))
    if rows_total <= target:
        return rows_total                              # full-extent block (legal)
    return (target // 8) * 8                           # ragged tail masked in-kernel


# --------------------------------------------------------------------------- #
# Kernels
# --------------------------------------------------------------------------- #
def _make_l1_kernel(total_rows, tile_rows, steps_per_chunk):
    def kernel(a_ref, b_ref, out_ref):
        c = pl.program_id(0)        # parallel slice (TensorCore shard)
        i = pl.program_id(1)        # reduction step within the slice

        @pl.when(i == 0)
        def _():
            out_ref[...] = jnp.zeros_like(out_ref)

        diff = jnp.abs(a_ref[...].astype(jnp.float32)
                       - b_ref[...].astype(jnp.float32))

        # NOTE: row0 is computed from the *unclamped* grid index, while the data
        # comes from the block index clamped inside the index_map.  The
        # `rows < total_rows` predicate therefore zeroes both the ragged tail and
        # any duplicated clamped block.  Keep index_map and this math in sync.
        row0 = (c * steps_per_chunk + i) * tile_rows
        is_full = row0 + tile_rows <= total_rows

        @pl.when(is_full)
        def _():                    # fast path: no masking work on full blocks
            out_ref[...] += jnp.sum(diff, axis=0, keepdims=True)[None]

        @pl.when(jnp.logical_not(is_full))
        def _():                    # ragged last block / clamped duplicate block
            rows = row0 + jax.lax.broadcasted_iota(jnp.int32, (tile_rows, 1), 0)
            masked = jnp.where(rows < total_rows, diff, 0.0)  # after math: kills NaNs
            out_ref[...] += jnp.sum(masked, axis=0, keepdims=True)[None]

    return kernel


def _make_masked_kernel(total_rows, tile_rows, steps_per_chunk):
    def kernel(a_ref, b_ref, m_ref, out_ref):
        c = pl.program_id(0)
        i = pl.program_id(1)

        @pl.when(i == 0)
        def _():
            out_ref[...] = jnp.zeros_like(out_ref)

        d = a_ref[...].astype(jnp.float32) - b_ref[...].astype(jnp.float32)
        w = d * d * m_ref[...].astype(jnp.float32)     # (tile,1) lane-broadcast

        row0 = (c * steps_per_chunk + i) * tile_rows
        is_full = row0 + tile_rows <= total_rows

        @pl.when(is_full)
        def _():
            out_ref[...] += jnp.sum(w, axis=0, keepdims=True)[None]

        @pl.when(jnp.logical_not(is_full))
        def _():
            rows = row0 + jax.lax.broadcasted_iota(jnp.int32, (tile_rows, 1), 0)
            wm = jnp.where(rows < total_rows, w, 0.0)  # after math: kills NaNs
            out_ref[...] += jnp.sum(wm, axis=0, keepdims=True)[None]

    return kernel


# --------------------------------------------------------------------------- #
# pallas_call plumbing
# --------------------------------------------------------------------------- #
def _reduction_call(kernel_factory, arrays, rows_total, tile_target,
                    num_parallel, vmem_limit):
    cols = arrays[0].shape[1]
    # Double-buffered VMEM bytes per block row over all inputs, lane-padded to
    # 128 (this accounts for the (tile, 1) mask block being padded in VMEM).
    row_bytes = 2 * sum(pl.cdiv(a.shape[1], 128) * 128 * a.dtype.itemsize
                        for a in arrays)
    tile = _pick_tile(rows_total, tile_target, row_bytes, vmem_limit)
    nblk = pl.cdiv(rows_total, tile)
    npar = max(1, min(int(num_parallel), nblk))
    spc = pl.cdiv(nblk, npar)              # reduction steps per parallel slice

    def in_map(c, i):
        # Clamp so uneven splits never DMA an out-of-range block; the kernel's
        # row predicate (computed from the UNclamped index) zeroes the
        # duplicated contribution.
        return (jnp.minimum(c * spc + i, nblk - 1), 0)

    in_specs = [pl.BlockSpec((tile, a.shape[1]), in_map) for a in arrays]

    partials = pl.pallas_call(
        kernel_factory(rows_total, tile, spc),
        out_shape=jax.ShapeDtypeStruct((npar, 1, cols), jnp.float32),
        grid_spec=pltpu.PrefetchScalarGridSpec(
            num_scalar_prefetch=0,
            grid=(npar, spc),
            in_specs=in_specs,
            # Output block is resident across the reduction axis (index ignores
            # i) -> in-kernel accumulator; one HBM writeback per slice.
            out_specs=pl.BlockSpec((1, 1, cols), lambda c, i: (c, 0, 0)),
        ),
        compiler_params=pltpu.CompilerParams(
            dimension_semantics=("parallel", "arbitrary"),
            vmem_limit_bytes=vmem_limit),
    )(*arrays)
    # Final cross-lane + cross-slice reduce of npar x cols values in plain JAX.
    return jnp.sum(partials)


# --------------------------------------------------------------------------- #
# Public wrapper (FeatureMetricLoss.forward)
# --------------------------------------------------------------------------- #
def feature_metric_loss(target_rgb_feat, nearby_view_rgb_feat, mask=None,
                        tile_rows=None, num_parallel=None):
    """Pallas-TPU implementation of FeatureMetricLoss.forward.

    target_rgb_feat, nearby_view_rgb_feat: [n_rays, n_samples=1, n_views+1, d+3]
        Keep them in their native dtype (e.g. bf16) -- the kernel upcasts per
        block after load; the op is purely HBM-bandwidth bound.
    mask (optional): [n_rays, n_views+1] (or with a trailing singleton dim).
    tile_rows / num_parallel: None -> generation-aware defaults.
    """
    assert target_rgb_feat.shape == nearby_view_rgb_feat.shape
    n_rays, n_samples, n_views_p1, n_dims = target_rgb_feat.shape
    n_elems = n_rays * n_samples * n_views_p1 * n_dims

    auto_npar, vmem_limit, auto_tile = _device_defaults()
    npar = auto_npar if num_parallel is None else int(num_parallel)
    tile_target = auto_tile if tile_rows is None else int(tile_rows)

    if mask is None:
        # Free (contiguous) reshape to the most lane-dense 2-D view available.
        rows, cols = _best_2d_view(n_elems)
        a = target_rgb_feat.reshape(rows, cols)
        b = nearby_view_rgb_feat.reshape(rows, cols)
        total = _reduction_call(_make_l1_kernel, (a, b), rows, tile_target,
                                npar, vmem_limit)
        return total / jnp.float32(n_elems)

    # ---- masked branch: sum((t-n)^2 * mask) / (sum(mask)*(V+1)*(d+3)+1e-6) ----
    # TODO(synk): the torch code's mask.repeat(1,1,1).permute(2,0,1) broadcast
    # only type-checks for specific caller-side mask shapes; we implement the
    # intended per-(ray, view) weighting.
    assert n_samples == 1, "masked FeatureMetricLoss assumes n_samples == 1"
    if mask.ndim == 3 and mask.shape[-1] == 1:
        mask = mask[..., 0]
    assert mask.shape == (n_rays, n_views_p1), mask.shape

    a = target_rgb_feat.reshape(-1, n_dims)
    b = nearby_view_rgb_feat.reshape(-1, n_dims)
    m = mask.astype(jnp.float32).reshape(-1, 1)        # [n_rays*(n_views+1), 1]
    rows_total = a.shape[0]

    sq = _reduction_call(_make_masked_kernel, (a, b, m), rows_total,
                         tile_target, npar, vmem_limit)
    mask_sum = jnp.sum(mask.astype(jnp.float32))       # tiny -> plain JAX
    denom = mask_sum * jnp.float32(n_views_p1 * n_dims) + jnp.float32(1e-6)
    return sq / denom


# --------------------------------------------------------------------------- #
# Self-test
# --------------------------------------------------------------------------- #
if __name__ == "__main__":
    key = jax.random.PRNGKey(0)
    k1, k2, k3, k4, k5, k6, k7 = jax.random.split(key, 7)
    d_p3 = 35  # d=32 feature dims + 3 rgb

    # Case 1: L1 branch, lane-dense fast path, single full-extent block.
    tgt = jax.random.normal(k1, (32, 1, 4, d_p3), jnp.float32)
    nby = jax.random.normal(k2, (32, 1, 4, d_p3), jnp.float32)
    loss = feature_metric_loss(tgt, nby)
    jax.block_until_ready(loss)
    ref = jnp.mean(jnp.abs(nby - tgt))
    assert jnp.allclose(loss, ref, rtol=1e-5, atol=1e-6), (loss, ref)

    # Case 2: L1 branch, lane-dense, multi-block grid with a ragged last block
    # and a forced 2-way parallel axis (exercises clamped duplicate blocks and
    # the in-kernel partial-block mask path).
    tgt2 = jax.random.normal(k3, (96, 1, 4, d_p3), jnp.float32)
    nby2 = jax.random.normal(k4, (96, 1, 4, d_p3), jnp.float32)
    loss2 = feature_metric_loss(tgt2, nby2, tile_rows=16, num_parallel=2)
    jax.block_until_ready(loss2)
    ref2 = jnp.mean(jnp.abs(nby2 - tgt2))
    assert jnp.allclose(loss2, ref2, rtol=1e-5, atol=1e-6), (loss2, ref2)

    # Case 3: L1 branch, non-multiple-of-128 fallback (divisor-based 2-D view).
    tgt3 = jax.random.normal(k5, (8, 1, 3, d_p3), jnp.float32)
    nby3 = jax.random.normal(k6, (8, 1, 3, d_p3), jnp.float32)
    loss3 = feature_metric_loss(tgt3, nby3)
    jax.block_until_ready(loss3)
    ref3 = jnp.mean(jnp.abs(nby3 - tgt3))
    assert jnp.allclose(loss3, ref3, rtol=1e-5, atol=1e-6), (loss3, ref3)

    # Case 4: masked branch with ragged last block + forced 2-way parallel axis.
    tgt4 = jax.random.normal(k1, (9, 1, 4, d_p3), jnp.float32)
    nby4 = jax.random.normal(k2, (9, 1, 4, d_p3), jnp.float32)
    msk = (jax.random.uniform(k7, (9, 4)) > 0.3).astype(jnp.float32)
    loss4 = feature_metric_loss(tgt4, nby4, msk, tile_rows=8, num_parallel=2)
    jax.block_until_ready(loss4)
    fd = (tgt4 - nby4)[:, 0]                           # [n_rays, n_views+1, d+3]
    ref4 = jnp.sum(fd * fd * msk[..., None]) / (jnp.sum(msk) * 4 * d_p3 + 1e-6)
    assert jnp.allclose(loss4, ref4, rtol=1e-5, atol=1e-6), (loss4, ref4)

    print("KERNEL_OK")
</pallas_src>

<mosaic_0001>
module attributes {stable_mosaic.version = 11 : i64} {
  func.func @kernel(%arg0: i32, %arg1: i32, %arg2: memref<35x128xf32, #tpu.memory_space<vmem>>, %arg3: memref<35x128xf32, #tpu.memory_space<vmem>>, %arg4: memref<1x1x128xf32, #tpu.memory_space<vmem>>) attributes {dimension_semantics = [#tpu.dimension_semantics<parallel>, #tpu.dimension_semantics<arbitrary>], iteration_bounds = array<i64: 1, 1>, scalar_prefetch = 0 : i64, scratch_operands = 0 : i64, tpu.core_type = #tpu.core_type<tc>, window_params = [{transform_indices = @transform_0, window_bounds = array<i64: 35, 128>}, {transform_indices = @transform_1, window_bounds = array<i64: 35, 128>}, {transform_indices = @transform_2, window_bounds = array<i64: 1, 1, 128>}]} {
    %c0_i32 = arith.constant 0 : i32
    %0 = arith.cmpi eq, %arg1, %c0_i32 : i32
    %1 = arith.extui %0 : i1 to i32
    %c0_i32_0 = arith.constant 0 : i32
    %2 = arith.cmpi ne, %1, %c0_i32_0 : i32
    scf.if %2 {
      %cst = arith.constant 0.000000e+00 : f32
      %17 = vector.broadcast %cst : f32 to vector<1x1x128xf32>
      %c0_8 = arith.constant 0 : index
      %c0_9 = arith.constant 0 : index
      %c0_10 = arith.constant 0 : index
      %18 = vector.load %arg4[%c0_8, %c0_9, %c0_10] : memref<1x1x128xf32, #tpu.memory_space<vmem>>, vector<1x1x128xf32>
      tpu.vector_store %arg4[%c0_8, %c0_9, %c0_10], %17 {strides = array<i32>} : memref<1x1x128xf32, #tpu.memory_space<vmem>>, vector<1x1x128xf32>,
    } else {
    }
    %c0 = arith.constant 0 : index
    %c0_1 = arith.constant 0 : index
    %3 = vector.load %arg2[%c0, %c0_1] : memref<35x128xf32, #tpu.memory_space<vmem>>, vector<35x128xf32>
    %c0_2 = arith.constant 0 : index
    %c0_3 = arith.constant 0 : index
    %4 = vector.load %arg3[%c0_2, %c0_3] : memref<35x128xf32, #tpu.memory_space<vmem>>, vector<35x128xf32>
    %5 = arith.subf %3, %4 : vector<35x128xf32>
    %6 = math.absf %5 : vector<35x128xf32>
    %c1_i32 = arith.constant 1 : i32
    %7 = arith.muli %arg0, %c1_i32 : i32
    %8 = arith.addi %7, %arg1 : i32
    %c35_i32 = arith.constant 35 : i32
    %9 = arith.muli %8, %c35_i32 : i32
    %c35_i32_4 = arith.constant 35 : i32
    %10 = arith.addi %9, %c35_i32_4 : i32
    %c35_i32_5 = arith.constant 35 : i32
    %11 = arith.cmpi sle, %10, %c35_i32_5 : i32
    %12 = arith.extui %11 : i1 to i32
    %c0_i32_6 = arith.constant 0 : i32
    %13 = arith.cmpi ne, %12, %c0_i32_6 : i32
    scf.if %13 {
      %c0_8 = arith.constant 0 : index
      %c0_9 = arith.constant 0 : index
      %c0_10 = arith.constant 0 : index
      %17 = vector.load %arg4[%c0_8, %c0_9, %c0_10] : memref<1x1x128xf32, #tpu.memory_space<vmem>>, vector<1x1x128xf32>
      %cst = arith.constant dense<0.000000e+00> : vector<128xf32>
      %18 = vector.multi_reduction <add>, %6, %cst [0] : vector<35x128xf32> to vector<128xf32>
      %19 = vector.shape_cast %18 : vector<128xf32> to vector<1x128xf32>
      %20 = vector.shape_cast %19 : vector<1x128xf32> to vector<1x1x128xf32>
      %21 = arith.addf %17, %20 : vector<1x1x128xf32>
      %c0_11 = arith.constant 0 : index
      %c0_12 = arith.constant 0 : index
      %c0_13 = arith.constant 0 : index
      %22 = vector.load %arg4[%c0_11, %c0_12, %c0_13] : memref<1x1x128xf32, #tpu.memory_space<vmem>>, vector<1x1x128xf32>
      tpu.vector_store %arg4[%c0_11, %c0_12, %c0_13], %21 {strides = array<i32>} : memref<1x1x128xf32, #tpu.memory_space<vmem>>, vector<1x1x128xf32>,
    } else {
    }
    %true = arith.constant true
    %14 = arith.xori %11, %true : i1
    %15 = arith.extui %14 : i1 to i32
    %c0_i32_7 = arith.constant 0 : i32
    %16 = arith.cmpi ne, %15, %c0_i32_7 : i32
    scf.if %16 {
      %17 = tpu.iota {dimensions = array<i32: 0>} : vector<35x1xi32>
      %18 = vector.broadcast %9 : i32 to vector<35x1xi32>
      %19 = arith.addi %18, %17 : vector<35x1xi32>
      %c35_i32_8 = arith.constant 35 : i32
      %20 = vector.broadcast %c35_i32_8 : i32 to vector<35x1xi32>
      %21 = arith.cmpi slt, %19, %20 : vector<35x1xi32>
      %cst = arith.constant 0.000000e+00 : f32
      %22 = vector.shape_cast %21 : vector<35x1xi1> to vector<35x1xi1>
      %23 = vector.broadcast %22 : vector<35x1xi1> to vector<35x128xi1>
      %24 = vector.broadcast %cst : f32 to vector<35x128xf32>
      %25 = arith.select %23, %6, %24 : vector<35x128xi1>, vector<35x128xf32>
      %c0_9 = arith.constant 0 : index
      %c0_10 = arith.constant 0 : index
      %c0_11 = arith.constant 0 : index
      %26 = vector.load %arg4[%c0_9, %c0_10, %c0_11] : memref<1x1x128xf32, #tpu.memory_space<vmem>>, vector<1x1x128xf32>
      %cst_12 = arith.constant dense<0.000000e+00> : vector<128xf32>
      %27 = vector.multi_reduction <add>, %25, %cst_12 [0] : vector<35x128xf32> to vector<128xf32>
      %28 = vector.shape_cast %27 : vector<128xf32> to vector<1x128xf32>
      %29 = vector.shape_cast %28 : vector<1x128xf32> to vector<1x1x128xf32>
      %30 = arith.addf %26, %29 : vector<1x1x128xf32>
      %c0_13 = arith.constant 0 : index
      %c0_14 = arith.constant 0 : index
      %c0_15 = arith.constant 0 : index
      %31 = vector.load %arg4[%c0_13, %c0_14, %c0_15] : memref<1x1x128xf32, #tpu.memory_space<vmem>>, vector<1x1x128xf32>
      tpu.vector_store %arg4[%c0_13, %c0_14, %c0_15], %30 {strides = array<i32>} : memref<1x1x128xf32, #tpu.memory_space<vmem>>, vector<1x1x128xf32>,
    } else {
    }
    return
  }
  func.func @transform_0(%arg0: i32, %arg1: i32) -> (i32, i32) {
    %c1_i32 = arith.constant 1 : i32
    %0 = arith.muli %arg0, %c1_i32 : i32
    %1 = arith.addi %0, %arg1 : i32
    %c0_i32 = arith.constant 0 : i32
    %2 = arith.minsi %1, %c0_i32 : i32
    %c0_i32_0 = arith.constant 0 : i32
    %c0_i32_1 = arith.constant 0 : i32
    return %2, %c0_i32_0 : i32, i32
  }
  func.func @transform_1(%arg0: i32, %arg1: i32) -> (i32, i32) {
    %c1_i32 = arith.constant 1 : i32
    %0 = arith.muli %arg0, %c1_i32 : i32
    %1 = arith.addi %0, %arg1 : i32
    %c0_i32 = arith.constant 0 : i32
    %2 = arith.minsi %1, %c0_i32 : i32
    %c0_i32_0 = arith.constant 0 : i32
    %c0_i32_1 = arith.constant 0 : i32
    return %2, %c0_i32_0 : i32, i32
  }
  func.func @transform_2(%arg0: i32, %arg1: i32) -> (i32, i32, i32) {
    %c0_i32 = arith.constant 0 : i32
    %c0_i32_0 = arith.constant 0 : i32
    %c0_i32_1 = arith.constant 0 : i32
    return %arg0, %c0_i32, %c0_i32_0 : i32, i32, i32
  }
}

</mosaic_0001>

<llo_original>
// kernel: tpu_custom_call.1
$region0: #{tpu_custom_call.1}
  #allocation0 [shape = 'u32[]', space=smem, size = 0x4, offset = 0x4, fixed_abs, tag = 'smem constant byte address 0x4 - core index']
  #allocation1 [shape = 'u32[144,128]{1,0:T(1,128)}', space=vmem, size = 0x12000, scoped, tag = 'internal scratch']
  %s0 = inlined_call_operand.hbm [shape: f32[35,128], index: 0, kind: input, shape index: {}]
  %s1 = inlined_call_operand.hbm [shape: f32[35,128], index: 1, kind: input, shape index: {}]
  %s2 = inlined_call_operand.hbm [shape: f32[1,1,128], index: 2, kind: output, shape index: {}]
  %s3 = sld [smem:[#allocation0]]
  $region38: #{tpu_custom_call.1} parent=0
    _
  %s5 = ssub.s32 1, %s3
  %s6 = scalar_select 0, %s5, %s3
  $region1: #{tpu_custom_call.1} parent=0
    #allocation2 [shape = 'u8[20480]{0}', space=vmem, size = 0x5000, scoped, tag = 'input window, operand 0, single buffered']
    #allocation3 [shape = 's32[1]{0}', space=sflag, size = 0x4, scoped, tag = 'scoped memory for tpu_custom_call.1']
    #allocation4 [shape = 's32[1]{0}', space=sflag, size = 0x4, scoped, tag = 'scoped memory for tpu_custom_call.1']
    #allocation5 [shape = 'u8[20480]{0}', space=vmem, size = 0x5000, scoped, tag = 'input window, operand 1, single buffered']
    #allocation6 [shape = 's32[1]{0}', space=sflag, size = 0x4, scoped, tag = 'scoped memory for tpu_custom_call.1']
    #allocation7 [shape = 'u8[512]{0}', space=vmem, size = 0x400, scoped, tag = 'output window, operand 0, single buffered']
    %7 = vsyncpa [#allocation3], 0
    %8 = vsyncpa [#allocation6], 0
    %9 = vsyncpa [#allocation4], 0
    // Predicated region
    $region2: #{tpu_custom_call.1} parent=1 // pred_check
      _
    $region3: #{tpu_custom_call.1} parent=1 // pred_check_branch
      %11 = sbr.rel (0) target = $region5
    $region4: #{tpu_custom_call.1} parent=1 // pred_region
      %s12 = sadd.s32 0, 0
      %p13 = scmp.lt.s32.totalorder %s12, 0
      %s14 = scalar_select %p13, %s12, 0
      %s15 = smul.u32 5, %s14
      %s17 = ssub.s32 640, 640
      %18 = vsyncadd [#allocation3], %s17
      %s19 = smul.addr %s15, 128
      %s20 = scalar_lea.hbm %s0, %s19
      %s21 = sshll.u32 [#allocation2], 4
      %s22 = int_to_ptr.vmem [resolvable:$true] %s21
      %27 = dma.hbm_to_vmem [thread:$0]  %s20, 640, %s22, [#allocation3], 128, 128, 8
    $region5: #{tpu_custom_call.1} parent=1 // pred_fallthru
      _
    // Predicated region
    $region6: #{tpu_custom_call.1} parent=1 // pred_check
      _
    $region7: #{tpu_custom_call.1} parent=1 // pred_check_branch
      %29 = sbr.rel (0) target = $region9
    $region8: #{tpu_custom_call.1} parent=1 // pred_region
      %s30 = sadd.s32 0, 0
      %p31 = scmp.lt.s32.totalorder %s30, 0
      %s32 = scalar_select %p31, %s30, 0
      %s33 = smul.u32 5, %s32
      %s35 = ssub.s32 640, 640
      %36 = vsyncadd [#allocation6], %s35
      %s37 = smul.addr %s33, 128
      %s38 = scalar_lea.hbm %s1, %s37
      %s39 = sshll.u32 [#allocation5], 4
      %s40 = int_to_ptr.vmem [resolvable:$true] %s39
      %45 = dma.hbm_to_vmem [thread:$0]  %s38, 640, %s40, [#allocation6], 128, 128, 8
    $region9: #{tpu_custom_call.1} parent=1 // pred_fallthru
      _
    // Predicated region
    $region10: #{tpu_custom_call.1} parent=1 // pred_check
      _
    $region11: #{tpu_custom_call.1} parent=1 // pred_check_branch
      %47 = sbr.rel (0) target = $region13
    $region12: #{tpu_custom_call.1} parent=1 // pred_region
      %48 = dma.done [#allocation3], 640
    $region13: #{tpu_custom_call.1} parent=1 // pred_fallthru
      _
    // Predicated region
    $region14: #{tpu_custom_call.1} parent=1 // pred_check
      _
    $region15: #{tpu_custom_call.1} parent=1 // pred_check_branch
      %50 = sbr.rel (0) target = $region17
    $region16: #{tpu_custom_call.1} parent=1 // pred_region
      %51 = dma.done [#allocation6], 640
    $region17: #{tpu_custom_call.1} parent=1 // pred_fallthru
      _
    %s52 = sadd.s32 0, 0
    %p53 = scmp.lt.s32.totalorder %s52, 0
    %s54 = scalar_select %p53, %s52, 0
    %s55 = smul.u32 5, %s54
    %s56 = sadd.s32 0, 0
    %p57 = scmp.lt.s32.totalorder %s56, 0
    %s58 = scalar_select %p57, %s56, 0
    %s59 = smul.u32 5, %s58
    %p60 = scmp.eq.s32.totalorder 0, 0
    // Predicated region
    $region18: #{tpu_custom_call.1} parent=1 // pred_check
      %p61 = pneg %p60
    $region19: #{tpu_custom_call.1} parent=1 // pred_check_branch
      %63 = sbr.rel (%p61) target = $region21
    $region20: #{tpu_custom_call.1} parent=1 // pred_region
      %64 = vst [vmem:[#allocation7] sm:$0x1] 0.0
    $region21: #{tpu_custom_call.1} parent=1 // pred_fallthru
      _
    %v65 = vld [vmem:[#allocation2] sm:$0xff]
    %v66 = vld [vmem:[#allocation2 + $0x8] sm:$0xff]
    %v67 = vld [vmem:[#allocation2 + $0x10] sm:$0xff]
    %v68 = vld [vmem:[#allocation2 + $0x18] sm:$0xff]
    %v69 = vld [vmem:[#allocation2 + $0x20] sm:$0x7]
    %v70 = vld [vmem:[#allocation5] sm:$0xff]
    %v71 = vld [vmem:[#allocation5 + $0x8] sm:$0xff]
    %v72 = vld [vmem:[#allocation5 + $0x10] sm:$0xff]
    %v73 = vld [vmem:[#allocation5 + $0x18] sm:$0xff]
    %v74 = vld [vmem:[#allocation5 + $0x20] sm:$0x7]
    %v75 = vsub.f32 %v65, %v70
    %v76 = vsub.f32 %v66, %v71
    %v77 = vsub.f32 %v67, %v72
    %v78 = vsub.f32 %v68, %v73
    %v79 = vsub.f32 %v69, %v74
    %v80 = vand.u32 2147483647, %v75
    %v81 = vand.u32 2147483647, %v76
    %v82 = vand.u32 2147483647, %v77
    %v83 = vand.u32 2147483647, %v78
    %v84 = vand.u32 2147483647, %v79
    %s85 = sadd.s32 0, 0
    %s86 = smul.u32 %s85, 35
    %s87 = sadd.s32 %s86, 35
    %p88 = scmp.le.s32.totalorder %s87, 35
    // Predicated region
    $region22: #{tpu_custom_call.1} parent=1 // pred_check
      %p89 = pneg %p88
    $region23: #{tpu_custom_call.1} parent=1 // pred_check_branch
      %91 = sbr.rel (%p89) target = $region25
    $region24: #{tpu_custom_call.1} parent=1 // pred_region
      %v92 = vld [vmem:[#allocation7] sm:$0x1]
      %v93 = vadd.f32 %v80, %v81
      %v94 = vadd.f32 %v93, %v82
      %v95 = vadd.f32 %v94, %v83
      %vm96 = vcmask 1042432
      %v97 = vsel %vm96, %v84, 0.0
      %v98 = vadd.f32 %v95, %v97
      %v99 = vrot.slane %v98, 4
      %v100 = vadd.f32 %v98, %v99
      %v101 = vrot.slane %v100, 2
      %v102 = vadd.f32 %v100, %v101
      %v103 = vrot.slane %v102, 1
      %v104 = vadd.f32 %v102, %v103
      %v105 = vadd.f32 %v92, %v104
      %106 = vst [vmem:[#allocation7] sm:$0x1] %v105
    $region25: #{tpu_custom_call.1} parent=1 // pred_fallthru
      _
    %p107 = scmp.gt.s32.totalorder %s87, 35
    // Predicated region
    $region26: #{tpu_custom_call.1} parent=1 // pred_check
      %p108 = pneg %p107
    $region27: #{tpu_custom_call.1} parent=1 // pred_check_branch
      %110 = sbr.rel (%p108) target = $region29
    $region28: #{tpu_custom_call.1} parent=1 // pred_region
      %v111 = vlaneseq
      %v112 = vshrl.u32 %v111, 7
      %v113 = vadd.s32 %v112, 8
      %v114 = vadd.s32 %v112, 16
      %v115 = vadd.s32 %v112, 24
      %v116 = vadd.s32 %v112, 32
      %v117 = vstv %s86
      %v118 = vadd.s32 %v117, %v112
      %v119 = vadd.s32 %v117, %v113
      %v120 = vadd.s32 %v117, %v114
      %v121 = vadd.s32 %v117, %v115
      %v122 = vadd.s32 %v117, %v116
      %vm123 = vcmp.lt.s32.totalorder %v118, 35
      %vm124 = vcmp.lt.s32.totalorder %v119, 35
      %vm125 = vcmp.lt.s32.totalorder %v120, 35
      %vm126 = vcmp.lt.s32.totalorder %v121, 35
      %vm127 = vcmp.lt.s32.totalorder %v122, 35
      %v128 = vsel %vm123, 1, 0
      %v129 = vsel %vm124, 1, 0
      %v130 = vsel %vm125, 1, 0
      %v131 = vsel %vm126, 1, 0
      %v132 = vsel %vm127, 1, 0
      %vm133 = vcmp.eq.s32.totalorder %v128, 1
      %vm134 = vcmp.eq.s32.totalorder %v129, 1
      %vm135 = vcmp.eq.s32.totalorder %v130, 1
      %vm136 = vcmp.eq.s32.totalorder %v131, 1
      %vm137 = vcmp.eq.s32.totalorder %v132, 1
      %v138 = vsel %vm133, %v80, 0.0
      %v139 = vsel %vm134, %v81, 0.0
      %v140 = vsel %vm135, %v82, 0.0
      %v141 = vsel %vm136, %v83, 0.0
      %v142 = vsel %vm137, %v84, 0.0
      %v143 = vld [vmem:[#allocation7] sm:$0x1]
      %v144 = vadd.f32 %v138, %v139
      %v145 = vadd.f32 %v144, %v140
      %v146 = vadd.f32 %v145, %v141
      %vm147 = vcmask 1042432
      %v148 = vsel %vm147, %v142, 0.0
      %v149 = vadd.f32 %v146, %v148
      %v150 = vrot.slane %v149, 4
      %v151 = vadd.f32 %v149, %v150
      %v152 = vrot.slane %v151, 2
      %v153 = vadd.f32 %v151, %v152
      %v154 = vrot.slane %v153, 1
      %v155 = vadd.f32 %v153, %v154
      %v156 = vadd.f32 %v143, %v155
      %157 = vst [vmem:[#allocation7] sm:$0x1] %v156
    $region29: #{tpu_custom_call.1} parent=1 // pred_fallthru
      _
    // Predicated region
    $region30: #{tpu_custom_call.1} parent=1 // pred_check
      _
    $region31: #{tpu_custom_call.1} parent=1 // pred_check_branch
      %159 = sbr.rel (0) target = $region33
    $region32: #{tpu_custom_call.1} parent=1 // pred_region
      %s161 = ssub.s32 16, 16
      %162 = vsyncadd [#allocation4], %s161
      %s164 = sshll.u32 [#allocation7], 4
      %s165 = int_to_ptr.vmem [resolvable:$true] %s164
      %167 = dma.vmem_to_hbm [thread:$0]  %s165, 16, %s2, [#allocation4]
    $region33: #{tpu_custom_call.1} parent=1 // pred_fallthru
      _
    // Predicated region
    $region34: #{tpu_custom_call.1} parent=1 // pred_check
      _
    $region35: #{tpu_custom_call.1} parent=1 // pred_check_branch
      %169 = sbr.rel (0) target = $region37
    $region36: #{tpu_custom_call.1} parent=1 // pred_region
      %170 = dma.done [#allocation4], 16
    $region37: #{tpu_custom_call.1} parent=1 // pred_fallthru
      _
    %171 = vsyncpa [#allocation3], 1
    %172 = vsyncpa [#allocation6], 1
    %173 = vsyncpa [#allocation4], 1

</llo_original>
